<compile_context>
chip_gen: v6e
topology: v6e:2x2x1
jax: 0.10.0
libtpu: 0.0.40
codegen_flags: <defaults>
</compile_context>

<pallas_src>
import jax
import jax.numpy as jnp
from jax.experimental import pallas as pl
from jax.experimental.pallas import tpu as pltpu


def _round_up(x, m):
    return ((x + m - 1) // m) * m


def _er_kernel(x_ref, w1_ref, b1_ref, w2_ref, b2_ref, o_ref):
    # x_ref:  (TB, in_dim)        streamed activation (bf16 by default)
    # w1_ref: (in_dim, hidden)    resident, bf16
    # b1_ref: (1, hidden)         resident, f32
    # w2_ref: (hidden, out_pad)   resident, bf16 (lane-padded to mult. of 128)
    # b2_ref: (1, out_pad)        resident, f32
    # o_ref:  (TB, out_pad)
    # Embedding: narrow-dtype operands straight to the MXU, f32 accumulate.
    h = jnp.dot(x_ref[...], w1_ref[...], preferred_element_type=jnp.float32)
    h = jax.nn.sigmoid(h + b1_ref[...])          # bias + sigmoid in f32 (EUP)
    # Recovery: cast the activation back to the MXU operand dtype.
    h = h.astype(w2_ref.dtype)
    y = jnp.dot(h, w2_ref[...], preferred_element_type=jnp.float32)
    y = jax.nn.sigmoid(y + b2_ref[...])
    o_ref[...] = y.astype(o_ref.dtype)


def er_forward(x, w1, b1, w2, b2, *, block_b=512,
               compute_dtype=jnp.bfloat16, out_dtype=None):
    """Fused ER forward.

    x:  (B, in_dim)
    w1: (in_dim, hidden)   b1: (1, hidden)
    w2: (hidden, out_dim)  b2: (1, out_dim)
    returns (B, out_dim) in `out_dtype` (default: x.dtype)

    MXU operands (x, w1, w2) are cast once to `compute_dtype` (bf16 by
    default); accumulation, bias add and sigmoid stay in f32. Pass
    compute_dtype=jnp.float32 for a bit-faithful (slower) path.
    """
    B, in_dim = x.shape
    hidden = w1.shape[1]
    out_dim = w2.shape[1]
    out_dtype = x.dtype if out_dtype is None else out_dtype

    # Lane-dense output: pad recovery columns to a multiple of 128 so output
    # stores are unmasked full-lane vst's; slice back after the call.
    out_pad = _round_up(out_dim, 128)
    if out_pad != out_dim:
        w2 = jnp.pad(w2, ((0, 0), (0, out_pad - out_dim)))
        b2 = jnp.pad(b2, ((0, 0), (0, out_pad - out_dim)))

    # One-time casts OUTSIDE the kernel: MXU operands -> compute_dtype,
    # biases -> f32 for the f32 bias-add/sigmoid.
    x_c = x.astype(compute_dtype)
    w1_c = w1.astype(compute_dtype)
    w2_c = w2.astype(compute_dtype)
    b1_f = b1.astype(jnp.float32)
    b2_f = b2.astype(jnp.float32)

    # Batch tile: full batch if small; otherwise large tiles (amortise
    # per-step overhead) while guaranteeing >= 2 grid steps so v7x's two
    # TensorCores both get work on the "parallel" axis.
    if B <= 256:
        tb = B
    else:
        tb = min(block_b, _round_up(pl.cdiv(B, 2), 8))
    grid = (pl.cdiv(B, tb),)

    itemsize = lambda a: a.size * jnp.dtype(a.dtype).itemsize
    cost = pl.CostEstimate(
        flops=2 * B * (in_dim * hidden + hidden * out_pad),
        transcendentals=B * (hidden + out_pad),
        bytes_accessed=(itemsize(x_c) + B * out_pad * jnp.dtype(out_dtype).itemsize
                        + itemsize(w1_c) + itemsize(w2_c)
                        + itemsize(b1_f) + itemsize(b2_f)),
    )

    out = pl.pallas_call(
        _er_kernel,
        out_shape=jax.ShapeDtypeStruct((B, out_pad), out_dtype),
        grid_spec=pltpu.PrefetchScalarGridSpec(
            num_scalar_prefetch=0,
            grid=grid,
            in_specs=[
                pl.BlockSpec((tb, in_dim), lambda i: (i, 0)),
                # Weights / biases: constant block index -> resident in VMEM.
                pl.BlockSpec((in_dim, hidden), lambda i: (0, 0)),
                pl.BlockSpec((1, hidden), lambda i: (0, 0)),
                pl.BlockSpec((hidden, out_pad), lambda i: (0, 0)),
                pl.BlockSpec((1, out_pad), lambda i: (0, 0)),
            ],
            out_specs=pl.BlockSpec((tb, out_pad), lambda i: (i, 0)),
        ),
        compiler_params=pltpu.CompilerParams(
            dimension_semantics=("parallel",),
        ),
        cost_estimate=cost,
    )(x_c, w1_c, b1_f, w2_c, b2_f)

    return out[:, :out_dim] if out_pad != out_dim else out


def er_forward_ref(x, w1, b1, w2, b2, *, compute_dtype=jnp.float32):
    """Pure-JAX reference, mirroring the kernel's dtype policy."""
    h = jnp.dot(x.astype(compute_dtype), w1.astype(compute_dtype),
                preferred_element_type=jnp.float32)
    h = jax.nn.sigmoid(h + b1.astype(jnp.float32))
    y = jnp.dot(h.astype(compute_dtype), w2.astype(compute_dtype),
                preferred_element_type=jnp.float32)
    return jax.nn.sigmoid(y + b2.astype(jnp.float32))


if __name__ == "__main__":
    key = jax.random.PRNGKey(0)
    k_x, k_w1, k_b1, k_w2, k_b2 = jax.random.split(key, 5)

    # Shapes consistent with the module defaults
    # (in_dim=529, hidden_size=144, out_dim=529), small batch.
    B, in_dim, hidden, out_dim = 8, 529, 144, 529

    x = jax.random.normal(k_x, (B, in_dim), dtype=jnp.float32)
    # Deterministic parameter init (scaled normals in lieu of PyTorch's
    # kaiming-uniform; the forward math is identical).
    w1 = jax.random.normal(k_w1, (in_dim, hidden), dtype=jnp.float32) * 0.05
    b1 = jax.random.normal(k_b1, (1, hidden), dtype=jnp.float32) * 0.05
    w2 = jax.random.normal(k_w2, (hidden, out_dim), dtype=jnp.float32) * 0.05
    b2 = jax.random.normal(k_b2, (1, out_dim), dtype=jnp.float32) * 0.05

    out = er_forward(x, w1, b1, w2, b2)
    out = jax.block_until_ready(out)
    assert out.shape == (B, out_dim)

    # Matched-dtype reference (bf16 MXU operands, f32 accumulate/sigmoid):
    # validates the kernel itself.
    ref_bf16 = er_forward_ref(x, w1, b1, w2, b2, compute_dtype=jnp.bfloat16)
    assert jnp.allclose(out, ref_bf16, atol=5e-3, rtol=0.0), (
        float(jnp.max(jnp.abs(out - ref_bf16))))

    # Full-f32 PyTorch-equivalent reference: bf16 MXU operands only perturb
    # the sigmoid outputs (in [0,1]) slightly.
    ref_f32 = er_forward_ref(x, w1, b1, w2, b2, compute_dtype=jnp.float32)
    assert jnp.allclose(out, ref_f32, atol=3e-2, rtol=0.0), (
        float(jnp.max(jnp.abs(out - ref_f32))))

    print("KERNEL_OK")
</pallas_src>

<mosaic_0001>
module attributes {stable_mosaic.version = 11 : i64} {
  func.func @_er_kernel(%arg0: i32, %arg1: memref<8x529xbf16, #tpu.memory_space<vmem>>, %arg2: memref<529x144xbf16, #tpu.memory_space<vmem>>, %arg3: memref<1x144xf32, #tpu.memory_space<vmem>>, %arg4: memref<144x640xbf16, #tpu.memory_space<vmem>>, %arg5: memref<1x640xf32, #tpu.memory_space<vmem>>, %arg6: memref<8x640xf32, #tpu.memory_space<vmem>>) attributes {dimension_semantics = [#tpu.dimension_semantics<parallel>], iteration_bounds = array<i64: 1>, scalar_prefetch = 0 : i64, scratch_operands = 0 : i64, tpu.core_type = #tpu.core_type<tc>, window_params = [{transform_indices = @transform_0, window_bounds = array<i64: 8, 529>}, {pipeline_mode = #tpu.pipeline_mode<synchronous>, transform_indices = @transform_1, window_bounds = array<i64: 529, 144>}, {pipeline_mode = #tpu.pipeline_mode<synchronous>, transform_indices = @transform_2, window_bounds = array<i64: 1, 144>}, {pipeline_mode = #tpu.pipeline_mode<synchronous>, transform_indices = @transform_3, window_bounds = array<i64: 144, 640>}, {pipeline_mode = #tpu.pipeline_mode<synchronous>, transform_indices = @transform_4, window_bounds = array<i64: 1, 640>}, {transform_indices = @transform_5, window_bounds = array<i64: 8, 640>}]} {
    %c0 = arith.constant 0 : index
    %c0_0 = arith.constant 0 : index
    %0 = vector.load %arg1[%c0, %c0_0] : memref<8x529xbf16, #tpu.memory_space<vmem>>, vector<8x529xbf16>
    %c0_1 = arith.constant 0 : index
    %c0_2 = arith.constant 0 : index
    %1 = vector.load %arg2[%c0_1, %c0_2] : memref<529x144xbf16, #tpu.memory_space<vmem>>, vector<529x144xbf16>
    %cst = arith.constant dense<0.000000e+00> : vector<8x144xf32>
    %2 = tpu.matmul %0, %1, %cst {dimension_numbers = #tpu.dot_dimension_numbers<[1], [0], [0], [1], [0, 0, 1, 1], [], []>} : vector<8x529xbf16>, vector<529x144xbf16>, vector<8x144xf32> -> vector<8x144xf32>
    %c0_3 = arith.constant 0 : index
    %c0_4 = arith.constant 0 : index
    %3 = vector.load %arg3[%c0_3, %c0_4] : memref<1x144xf32, #tpu.memory_space<vmem>>, vector<1x144xf32>
    %4 = vector.broadcast %3 : vector<1x144xf32> to vector<8x144xf32>
    %5 = arith.addf %2, %4 : vector<8x144xf32>
    %6 = arith.negf %5 : vector<8x144xf32>
    %7 = math.exp %6 : vector<8x144xf32>
    %cst_5 = arith.constant 1.000000e+00 : f32
    %8 = vector.broadcast %cst_5 : f32 to vector<8x144xf32>
    %9 = arith.addf %8, %7 : vector<8x144xf32>
    %10 = arith.divf %8, %9 : vector<8x144xf32>
    %11 = arith.truncf %10 : vector<8x144xf32> to vector<8x144xbf16>
    %c0_6 = arith.constant 0 : index
    %c0_7 = arith.constant 0 : index
    %12 = vector.load %arg4[%c0_6, %c0_7] : memref<144x640xbf16, #tpu.memory_space<vmem>>, vector<144x640xbf16>
    %cst_8 = arith.constant dense<0.000000e+00> : vector<8x640xf32>
    %13 = tpu.matmul %11, %12, %cst_8 {dimension_numbers = #tpu.dot_dimension_numbers<[1], [0], [0], [1], [0, 0, 1, 1], [], []>} : vector<8x144xbf16>, vector<144x640xbf16>, vector<8x640xf32> -> vector<8x640xf32>
    %c0_9 = arith.constant 0 : index
    %c0_10 = arith.constant 0 : index
    %14 = vector.load %arg5[%c0_9, %c0_10] : memref<1x640xf32, #tpu.memory_space<vmem>>, vector<1x640xf32>
    %15 = vector.broadcast %14 : vector<1x640xf32> to vector<8x640xf32>
    %16 = arith.addf %13, %15 : vector<8x640xf32>
    %17 = arith.negf %16 : vector<8x640xf32>
    %18 = math.exp %17 : vector<8x640xf32>
    %cst_11 = arith.constant 1.000000e+00 : f32
    %19 = vector.broadcast %cst_11 : f32 to vector<8x640xf32>
    %20 = arith.addf %19, %18 : vector<8x640xf32>
    %21 = arith.divf %19, %20 : vector<8x640xf32>
    %c0_12 = arith.constant 0 : index
    %c0_13 = arith.constant 0 : index
    %22 = vector.load %arg6[%c0_12, %c0_13] : memref<8x640xf32, #tpu.memory_space<vmem>>, vector<8x640xf32>
    tpu.vector_store %arg6[%c0_12, %c0_13], %21 {strides = array<i32>} : memref<8x640xf32, #tpu.memory_space<vmem>>, vector<8x640xf32>,
    return
  }
  func.func @transform_0(%arg0: i32) -> (i32, i32) {
    %c0_i32 = arith.constant 0 : i32
    %c0_i32_0 = arith.constant 0 : i32
    return %arg0, %c0_i32 : i32, i32
  }
  func.func @transform_1(%arg0: i32) -> (i32, i32) {
    %c0_i32 = arith.constant 0 : i32
    %c0_i32_0 = arith.constant 0 : i32
    %c0_i32_1 = arith.constant 0 : i32
    return %c0_i32, %c0_i32_0 : i32, i32
  }
  func.func @transform_2(%arg0: i32) -> (i32, i32) {
    %c0_i32 = arith.constant 0 : i32
    %c0_i32_0 = arith.constant 0 : i32
    %c0_i32_1 = arith.constant 0 : i32
    return %c0_i32, %c0_i32_0 : i32, i32
  }
  func.func @transform_3(%arg0: i32) -> (i32, i32) {
    %c0_i32 = arith.constant 0 : i32
    %c0_i32_0 = arith.constant 0 : i32
    %c0_i32_1 = arith.constant 0 : i32
    return %c0_i32, %c0_i32_0 : i32, i32
  }
  func.func @transform_4(%arg0: i32) -> (i32, i32) {
    %c0_i32 = arith.constant 0 : i32
    %c0_i32_0 = arith.constant 0 : i32
    %c0_i32_1 = arith.constant 0 : i32
    return %c0_i32, %c0_i32_0 : i32, i32
  }
  func.func @transform_5(%arg0: i32) -> (i32, i32) {
    %c0_i32 = arith.constant 0 : i32
    %c0_i32_0 = arith.constant 0 : i32
    return %arg0, %c0_i32 : i32, i32
  }
}

</mosaic_0001>

<llo_original>
// kernel: tpu_custom_call.1
$region0: #{tpu_custom_call.1}
  #allocation0 [shape = 'u32[]', space=smem, size = 0x4, offset = 0x4, fixed_abs, tag = 'smem constant byte address 0x4 - core index']
  #allocation1 [shape = 'u32[144,128]{1,0:T(1,128)}', space=vmem, size = 0x12000, scoped, tag = 'internal scratch']
  %s0 = inlined_call_operand.vmem [shape: bf16[8,529], index: 0, kind: input, shape index: {}]
  %s1 = inlined_call_operand.vmem [shape: bf16[529,144], index: 1, kind: input, shape index: {}]
  %s2 = inlined_call_operand.vmem [shape: f32[1,144], index: 2, kind: input, shape index: {}]
  %s3 = inlined_call_operand.vmem [shape: bf16[144,640], index: 3, kind: input, shape index: {}]
  %s4 = inlined_call_operand.vmem [shape: f32[1,640], index: 4, kind: input, shape index: {}]
  %s5 = inlined_call_operand.hbm [shape: f32[8,640], index: 5, kind: output, shape index: {}]
  %s6 = sld [smem:[#allocation0]]
  $region30: #{tpu_custom_call.1} parent=0
    _
  %s8 = ssub.s32 1, %s6
  %s9 = scalar_select 0, %s8, %s6
  $region1: #{tpu_custom_call.1} parent=0
    #allocation2 [shape = 'u8[20480]{0}', space=vmem, size = 0x5000, scoped, tag = 'output window, operand 0, single buffered']
    #allocation3 [shape = 's32[1]{0}', space=sflag, size = 0x4, scoped, tag = 'scoped memory for tpu_custom_call.1']
    %10 = vsyncpa [#allocation3], 0
    // Predicated region
    $region2: #{tpu_custom_call.1} parent=1 // pred_check
      _
    $region3: #{tpu_custom_call.1} parent=1 // pred_check_branch
      %12 = sbr.rel (0) target = $region5
    $region4: #{tpu_custom_call.1} parent=1 // pred_region
      _
    $region5: #{tpu_custom_call.1} parent=1 // pred_fallthru
      _
    // Predicated region
    $region6: #{tpu_custom_call.1} parent=1 // pred_check
      _
    $region7: #{tpu_custom_call.1} parent=1 // pred_check_branch
      %14 = sbr.rel (0) target = $region9
    $region8: #{tpu_custom_call.1} parent=1 // pred_region
      _
    $region9: #{tpu_custom_call.1} parent=1 // pred_fallthru
      _
    // Predicated region
    $region10: #{tpu_custom_call.1} parent=1 // pred_check
      _
    $region11: #{tpu_custom_call.1} parent=1 // pred_check_branch
      %16 = sbr.rel (0) target = $region13
    $region12: #{tpu_custom_call.1} parent=1 // pred_region
      _
    $region13: #{tpu_custom_call.1} parent=1 // pred_fallthru
      _
    // Predicated region
    $region14: #{tpu_custom_call.1} parent=1 // pred_check
      _
    $region15: #{tpu_custom_call.1} parent=1 // pred_check_branch
      %18 = sbr.rel (0) target = $region17
    $region16: #{tpu_custom_call.1} parent=1 // pred_region
      _
    $region17: #{tpu_custom_call.1} parent=1 // pred_fallthru
      _
    // Predicated region
    $region18: #{tpu_custom_call.1} parent=1 // pred_check
      _
    $region19: #{tpu_custom_call.1} parent=1 // pred_check_branch
      %20 = sbr.rel (0) target = $region21
    $region20: #{tpu_custom_call.1} parent=1 // pred_region
      _
    $region21: #{tpu_custom_call.1} parent=1 // pred_fallthru
      _
    %v22 = vld [vmem:[%s0] sm:$0xff]
    %v23 = vld [vmem:[%s0 + $0x8] sm:$0xff]
    %v24 = vld [vmem:[%s0 + $0x10] sm:$0xf]
    %v25 = vld [vmem:[%s1] sm:$0xff]
    %v26 = vld [vmem:[%s1 + $0x8] sm:$0xff]
    %v27 = vld [vmem:[%s1 + $0x10] sm:$0xff]
    %v28 = vld [vmem:[%s1 + $0x18] sm:$0xff]
    %v29 = vld [vmem:[%s1 + $0x20] sm:$0xff]
    %v30 = vld [vmem:[%s1 + $0x28] sm:$0xff]
    %v31 = vld [vmem:[%s1 + $0x30] sm:$0xff]
    %v32 = vld [vmem:[%s1 + $0x38] sm:$0xff]
    %v33 = vld [vmem:[%s1 + $0x40] sm:$0xff]
    %v34 = vld [vmem:[%s1 + $0x48] sm:$0xff]
    %v35 = vld [vmem:[%s1 + $0x50] sm:$0xff]
    %v36 = vld [vmem:[%s1 + $0x58] sm:$0xff]
    %v37 = vld [vmem:[%s1 + $0x60] sm:$0xff]
    %v38 = vld [vmem:[%s1 + $0x68] sm:$0xff]
    %v39 = vld [vmem:[%s1 + $0x70] sm:$0xff]
    %v40 = vld [vmem:[%s1 + $0x78] sm:$0xff]
    %v41 = vld [vmem:[%s1 + $0x80] sm:$0xff]
    %v42 = vld [vmem:[%s1 + $0x88] sm:$0xff]
    %v43 = vld [vmem:[%s1 + $0x90] sm:$0xff]
    %v44 = vld [vmem:[%s1 + $0x98] sm:$0xff]
    %v45 = vld [vmem:[%s1 + $0xa0] sm:$0xff]
    %v46 = vld [vmem:[%s1 + $0xa8] sm:$0xff]
    %v47 = vld [vmem:[%s1 + $0xb0] sm:$0xff]
    %v48 = vld [vmem:[%s1 + $0xb8] sm:$0xff]
    %v49 = vld [vmem:[%s1 + $0xc0] sm:$0xff]
    %v50 = vld [vmem:[%s1 + $0xc8] sm:$0xff]
    %v51 = vld [vmem:[%s1 + $0xd0] sm:$0xff]
    %v52 = vld [vmem:[%s1 + $0xd8] sm:$0xff]
    %v53 = vld [vmem:[%s1 + $0xe0] sm:$0xff]
    %v54 = vld [vmem:[%s1 + $0xe8] sm:$0xff]
    %v55 = vld [vmem:[%s1 + $0xf0] sm:$0xff]
    %v56 = vld [vmem:[%s1 + $0xf8] sm:$0xff]
    %v57 = vld [vmem:[%s1 + $0x100] sm:$0xff]
    %v58 = vld [vmem:[%s1 + $0x108] sm:$0xff]
    %v59 = vld [vmem:[%s1 + $0x110] sm:$0xff]
    %v60 = vld [vmem:[%s1 + $0x118] sm:$0xff]
    %v61 = vld [vmem:[%s1 + $0x120] sm:$0xff]
    %v62 = vld [vmem:[%s1 + $0x128] sm:$0xff]
    %v63 = vld [vmem:[%s1 + $0x130] sm:$0xff]
    %v64 = vld [vmem:[%s1 + $0x138] sm:$0xff]
    %v65 = vld [vmem:[%s1 + $0x140] sm:$0xff]
    %v66 = vld [vmem:[%s1 + $0x148] sm:$0xff]
    %v67 = vld [vmem:[%s1 + $0x150] sm:$0xff]
    %v68 = vld [vmem:[%s1 + $0x158] sm:$0xff]
    %v69 = vld [vmem:[%s1 + $0x160] sm:$0xff]
    %v70 = vld [vmem:[%s1 + $0x168] sm:$0xff]
    %v71 = vld [vmem:[%s1 + $0x170] sm:$0xff]
    %v72 = vld [vmem:[%s1 + $0x178] sm:$0xff]
    %v73 = vld [vmem:[%s1 + $0x180] sm:$0xff]
    %v74 = vld [vmem:[%s1 + $0x188] sm:$0xff]
    %v75 = vld [vmem:[%s1 + $0x190] sm:$0xff]
    %v76 = vld [vmem:[%s1 + $0x198] sm:$0xff]
    %v77 = vld [vmem:[%s1 + $0x1a0] sm:$0xff]
    %v78 = vld [vmem:[%s1 + $0x1a8] sm:$0xff]
    %v79 = vld [vmem:[%s1 + $0x1b0] sm:$0xff]
    %v80 = vld [vmem:[%s1 + $0x1b8] sm:$0xff]
    %v81 = vld [vmem:[%s1 + $0x1c0] sm:$0xff]
    %v82 = vld [vmem:[%s1 + $0x1c8] sm:$0xff]
    %v83 = vld [vmem:[%s1 + $0x1d0] sm:$0xff]
    %v84 = vld [vmem:[%s1 + $0x1d8] sm:$0xff]
    %v85 = vld [vmem:[%s1 + $0x1e0] sm:$0xff]
    %v86 = vld [vmem:[%s1 + $0x1e8] sm:$0xff]
    %v87 = vld [vmem:[%s1 + $0x1f0] sm:$0xff]
    %v88 = vld [vmem:[%s1 + $0x1f8] sm:$0xff]
    %v89 = vld [vmem:[%s1 + $0x200] sm:$0xff]
    %v90 = vld [vmem:[%s1 + $0x208] sm:$0xff]
    %v91 = vld [vmem:[%s1 + $0x210] sm:$0x11]
    %v92 = vld [vmem:[%s2] sm:$0x3]
    %v94 = vlaneseq
    %v95 = vshrl.u32 %v94, 7
    %v96 = vsub.s32 0, %v95
    %v97 = vrot.slane %v92, %v96
    %v98 = vlaneseq
    %v99 = vshrl.u32 %v98, 7
    %v100 = vsub.s32 1, %v99
    %v101 = vrot.slane %v92, %v100
    %v107 = vunpack.c.l.b16 %v22
    %v108 = vunpack.c.h.b16 %v22
    %v109 = vunpack.c.l.b16 %v23
    %v110 = vunpack.c.h.b16 %v23
    %v111 = vunpack.c.l.b16 %v24
    %v112 = vpack.c.b16 %v107, %v107
    %v113 = vpack.c.b16 %v108, %v108
    %v114 = vpack.c.b16 %v109, %v109
    %v115 = vpack.c.b16 %v110, %v110
    %v116 = vpack.c.b16 %v111, %v111
    %v188 = vunpack.c.l.b16 %v25
    %v189 = vunpack.c.h.b16 %v25
    %v190 = vunpack.c.l.b16 %v26
    %v191 = vunpack.c.h.b16 %v26
    %v192 = vunpack.c.l.b16 %v27
    %v193 = vunpack.c.h.b16 %v27
    %v194 = vunpack.c.l.b16 %v28
    %v195 = vunpack.c.h.b16 %v28
    %v196 = vunpack.c.l.b16 %v29
    %v197 = vunpack.c.h.b16 %v29
    %v198 = vunpack.c.l.b16 %v30
    %v199 = vunpack.c.h.b16 %v30
    %v200 = vunpack.c.l.b16 %v31
    %v201 = vunpack.c.h.b16 %v31
    %v202 = vunpack.c.l.b16 %v32
    %v203 = vunpack.c.h.b16 %v32
    %v204 = vunpack.c.l.b16 %v33
    %v205 = vunpack.c.h.b16 %v33
    %v206 = vunpack.c.l.b16 %v34
    %v207 = vunpack.c.h.b16 %v34
    %v208 = vunpack.c.l.b16 %v35
    %v209 = vunpack.c.h.b16 %v35
    %v210 = vunpack.c.l.b16 %v36
    %v211 = vunpack.c.h.b16 %v36
    %v212 = vunpack.c.l.b16 %v37
    %v213 = vunpack.c.h.b16 %v37
    %v214 = vunpack.c.l.b16 %v38
    %v215 = vunpack.c.h.b16 %v38
    %v216 = vunpack.c.l.b16 %v39
    %v217 = vunpack.c.h.b16 %v39
    %v218 = vunpack.c.l.b16 %v40
    %v219 = vunpack.c.h.b16 %v40
    %v220 = vunpack.c.l.b16 %v41
    %v221 = vunpack.c.h.b16 %v41
    %v222 = vunpack.c.l.b16 %v42
    %v223 = vunpack.c.h.b16 %v42
    %v224 = vunpack.c.l.b16 %v43
    %v225 = vunpack.c.h.b16 %v43
    %v226 = vunpack.c.l.b16 %v44
    %v227 = vunpack.c.h.b16 %v44
    %v228 = vunpack.c.l.b16 %v45
    %v229 = vunpack.c.h.b16 %v45
    %v230 = vunpack.c.l.b16 %v46
    %v231 = vunpack.c.h.b16 %v46
    %v232 = vunpack.c.l.b16 %v47
    %v233 = vunpack.c.h.b16 %v47
    %v234 = vunpack.c.l.b16 %v48
    %v235 = vunpack.c.h.b16 %v48
    %v236 = vunpack.c.l.b16 %v49
    %v237 = vunpack.c.h.b16 %v49
    %v238 = vunpack.c.l.b16 %v50
    %v239 = vunpack.c.h.b16 %v50
    %v240 = vunpack.c.l.b16 %v51
    %v241 = vunpack.c.h.b16 %v51
    %v242 = vunpack.c.l.b16 %v52
    %v243 = vunpack.c.h.b16 %v52
    %v244 = vunpack.c.l.b16 %v53
    %v245 = vunpack.c.h.b16 %v53
    %v246 = vunpack.c.l.b16 %v54
    %v247 = vunpack.c.h.b16 %v54
    %v248 = vunpack.c.l.b16 %v55
    %v249 = vunpack.c.h.b16 %v55
    %v250 = vunpack.c.l.b16 %v56
    %v251 = vunpack.c.h.b16 %v56
    %v252 = vunpack.c.l.b16 %v57
    %v253 = vunpack.c.h.b16 %v57
    %v254 = vunpack.c.l.b16 %v58
    %v255 = vunpack.c.h.b16 %v58
    %v256 = vunpack.c.l.b16 %v59
    %v257 = vunpack.c.h.b16 %v59
    %v258 = vunpack.c.l.b16 %v60
    %v259 = vunpack.c.h.b16 %v60
    %v260 = vunpack.c.l.b16 %v61
    %v261 = vunpack.c.h.b16 %v61
    %v262 = vunpack.c.l.b16 %v62
    %v263 = vunpack.c.h.b16 %v62
    %v264 = vunpack.c.l.b16 %v63
    %v265 = vunpack.c.h.b16 %v63
    %v266 = vunpack.c.l.b16 %v64
    %v267 = vunpack.c.h.b16 %v64
    %v268 = vunpack.c.l.b16 %v65
    %v269 = vunpack.c.h.b16 %v65
    %v270 = vunpack.c.l.b16 %v66
    %v271 = vunpack.c.h.b16 %v66
    %v272 = vunpack.c.l.b16 %v67
    %v273 = vunpack.c.h.b16 %v67
    %v274 = vunpack.c.l.b16 %v68
    %v275 = vunpack.c.h.b16 %v68
    %v276 = vunpack.c.l.b16 %v69
    %v277 = vunpack.c.h.b16 %v69
    %v278 = vunpack.c.l.b16 %v70
    %v279 = vunpack.c.h.b16 %v70
    %v280 = vunpack.c.l.b16 %v71
    %v281 = vunpack.c.h.b16 %v71
    %v282 = vunpack.c.l.b16 %v72
    %v283 = vunpack.c.h.b16 %v72
    %v284 = vunpack.c.l.b16 %v73
    %v285 = vunpack.c.h.b16 %v73
    %v286 = vunpack.c.l.b16 %v74
    %v287 = vunpack.c.h.b16 %v74
    %v288 = vunpack.c.l.b16 %v75
    %v289 = vunpack.c.h.b16 %v75
    %v290 = vunpack.c.l.b16 %v76
    %v291 = vunpack.c.h.b16 %v76
    %v292 = vunpack.c.l.b16 %v77
    %v293 = vunpack.c.h.b16 %v77
    %v294 = vunpack.c.l.b16 %v78
    %v295 = vunpack.c.h.b16 %v78
    %v296 = vunpack.c.l.b16 %v79
    %v297 = vunpack.c.h.b16 %v79
    %v298 = vunpack.c.l.b16 %v80
    %v299 = vunpack.c.h.b16 %v80
    %v300 = vunpack.c.l.b16 %v81
    %v301 = vunpack.c.h.b16 %v81
    %v302 = vunpack.c.l.b16 %v82
    %v303 = vunpack.c.h.b16 %v82
    %v304 = vunpack.c.l.b16 %v83
    %v305 = vunpack.c.h.b16 %v83
    %v306 = vunpack.c.l.b16 %v84
    %v307 = vunpack.c.h.b16 %v84
    %v308 = vunpack.c.l.b16 %v85
    %v309 = vunpack.c.h.b16 %v85
    %v310 = vunpack.c.l.b16 %v86
    %v311 = vunpack.c.h.b16 %v86
    %v312 = vunpack.c.l.b16 %v87
    %v313 = vunpack.c.h.b16 %v87
    %v314 = vunpack.c.l.b16 %v88
    %v315 = vunpack.c.h.b16 %v88
    %v316 = vunpack.c.l.b16 %v89
    %v317 = vunpack.c.h.b16 %v89
    %v318 = vunpack.c.l.b16 %v90
    %v319 = vunpack.c.h.b16 %v90
    %v320 = vunpack.c.l.b16 %v91
    %v321 = vunpack.c.h.b16 %v91
    %v322 = vpack.c.b16 %v190, %v188
    %v323 = vpack.c.b16 %v191, %v189
    %v324 = vpack.c.b16 %v194, %v192
    %v325 = vpack.c.b16 %v195, %v193
    %v326 = vpack.c.b16 %v198, %v196
    %v327 = vpack.c.b16 %v199, %v197
    %v328 = vpack.c.b16 %v202, %v200
    %v329 = vpack.c.b16 %v203, %v201
    %v330 = vpack.c.b16 %v206, %v204
    %v331 = vpack.c.b16 %v207, %v205
    %v332 = vpack.c.b16 %v210, %v208
    %v333 = vpack.c.b16 %v211, %v209
    %v334 = vpack.c.b16 %v214, %v212
    %v335 = vpack.c.b16 %v215, %v213
    %v336 = vpack.c.b16 %v218, %v216
    %v337 = vpack.c.b16 %v219, %v217
    %v338 = vpack.c.b16 %v222, %v220
    %v339 = vpack.c.b16 %v223, %v221
    %v340 = vpack.c.b16 %v226, %v224
    %v341 = vpack.c.b16 %v227, %v225
    %v342 = vpack.c.b16 %v230, %v228
    %v343 = vpack.c.b16 %v231, %v229
    %v344 = vpack.c.b16 %v234, %v232
    %v345 = vpack.c.b16 %v235, %v233
    %v346 = vpack.c.b16 %v238, %v236
    %v347 = vpack.c.b16 %v239, %v237
    %v348 = vpack.c.b16 %v242, %v240
    %v349 = vpack.c.b16 %v243, %v241
    %v350 = vpack.c.b16 %v246, %v244
    %v351 = vpack.c.b16 %v247, %v245
    %v352 = vpack.c.b16 %v250, %v248
    %v353 = vpack.c.b16 %v251, %v249
    %v354 = vpack.c.b16 %v254, %v252
    %v355 = vpack.c.b16 %v255, %v253
    %v356 = vpack.c.b16 %v258, %v256
    %v357 = vpack.c.b16 %v259, %v257
    %v358 = vpack.c.b16 %v262, %v260
    %v359 = vpack.c.b16 %v263, %v261
    %v360 = vpack.c.b16 %v266, %v264
    %v361 = vpack.c.b16 %v267, %v265
    %v362 = vpack.c.b16 %v270, %v268
    %v363 = vpack.c.b16 %v271, %v269
    %v364 = vpack.c.b16 %v274, %v272
    %v365 = vpack.c.b16 %v275, %v273
    %v366 = vpack.c.b16 %v278, %v276
    %v367 = vpack.c.b16 %v279, %v277
    %v368 = vpack.c.b16 %v282, %v280
    %v369 = vpack.c.b16 %v283, %v281
    %v370 = vpack.c.b16 %v286, %v284
    %v371 = vpack.c.b16 %v287, %v285
    %v372 = vpack.c.b16 %v290, %v288
    %v373 = vpack.c.b16 %v291, %v289
    %v374 = vpack.c.b16 %v294, %v292
    %v375 = vpack.c.b16 %v295, %v293
    %v376 = vpack.c.b16 %v298, %v296
    %v377 = vpack.c.b16 %v299, %v297
    %v378 = vpack.c.b16 %v302, %v300
    %v379 = vpack.c.b16 %v303, %v301
    %v380 = vpack.c.b16 %v306, %v304
    %v381 = vpack.c.b16 %v307, %v305
    %v382 = vpack.c.b16 %v310, %v308
    %v383 = vpack.c.b16 %v311, %v309
    %v384 = vpack.c.b16 %v314, %v312
    %v385 = vpack.c.b16 %v315, %v313
    %v386 = vpack.c.b16 %v318, %v316
    %v387 = vpack.c.b16 %v319, %v317
    %v388 = vpack.c.b16 %v320, %v320
    %v389 = vpack.c.b16 %v321, %v321
    %vm456 = vcmask 138240
    %v458 = vsel %vm456, %v116, 0
    %vm460 = vcmask 1040384
    %v461 = vsel 0, 4294967295, 65535
    %v462 = vsel %vm460, %v461, 0
    %v464 = vand.u32 %v388, %v462
    %v467 = vand.u32 %v389, %v462
    %469 = vmatprep.subr.bf16.mxu0 %v337
    %470 = vmatpush1.bf16.msra.mxu0 %v336
    %471 = vmatprep.subr.bf16.mxu0 %v335
    %472 = vmatpush1.bf16.msra.mxu0 %v334
    %473 = vmatprep.subr.bf16.mxu0 %v333
    %474 = vmatpush1.bf16.msra.mxu0 %v332
    %475 = vmatprep.subr.bf16.mxu0 %v331
    %476 = vmatpush1.bf16.msra.mxu0 %v330
    %477 = vmatprep.subr.bf16.mxu0 %v329
    %478 = vmatpush1.bf16.msra.mxu0 %v328
    %479 = vmatprep.subr.bf16.mxu0 %v327
    %480 = vmatpush1.bf16.msra.mxu0 %v326
    %481 = vmatprep.subr.bf16.mxu0 %v325
    %482 = vmatpush1.bf16.msra.mxu0 %v324
    %483 = vmatprep.subr.bf16.mxu0 %v323
    %484 = vmatpush1.bf16.msra.mxu0 %v322
    %485 = vmatprep.subr.bf16.mxu0 %v353
    %486 = vmatpush2.bf16.msra.mxu0 %v352
    %487 = vmatprep.subr.bf16.mxu0 %v351
    %488 = vmatpush2.bf16.msra.mxu0 %v350
    %489 = vmatprep.subr.bf16.mxu0 %v349
    %490 = vmatpush2.bf16.msra.mxu0 %v348
    %491 = vmatprep.subr.bf16.mxu0 %v347
    %492 = vmatpush2.bf16.msra.mxu0 %v346
    %493 = vmatprep.subr.bf16.mxu0 %v345
    %494 = vmatpush2.bf16.msra.mxu0 %v344
    %495 = vmatprep.subr.bf16.mxu0 %v343
    %496 = vmatpush2.bf16.msra.mxu0 %v342
    %497 = vmatprep.subr.bf16.mxu0 %v341
    %498 = vmatpush2.bf16.msra.mxu0 %v340
    %499 = vmatprep.subr.bf16.mxu0 %v339
    %500 = vmatpush2.bf16.msra.mxu0 %v338
    %501 = vmatprep.mubr.bf16.mxu0 %v113
    %502 = vmatmul.mubr.bf16.gmra.mxu0 %v112
    %v503 = vpop.f32.mrf.mxu0
    %v504 = vadd.f32 %v97, %v503
    %v505 = vpop.f32.mrf.mxu0
    %v506 = vadd.f32 %v101, %v505
    %v507 = vpop.f32.mrf.mxu0
    %v508 = vpop.f32.mrf.mxu0
    %509 = vdwg.mxu0
    %510 = vmatprep.subr.bf16.mxu0 %v369
    %511 = vmatpush1.bf16.msra.mxu0 %v368
    %512 = vmatprep.subr.bf16.mxu0 %v367
    %513 = vmatpush1.bf16.msra.mxu0 %v366
    %514 = vmatprep.subr.bf16.mxu0 %v365
    %515 = vmatpush1.bf16.msra.mxu0 %v364
    %516 = vmatprep.subr.bf16.mxu0 %v363
    %517 = vmatpush1.bf16.msra.mxu0 %v362
    %518 = vmatprep.subr.bf16.mxu0 %v361
    %519 = vmatpush1.bf16.msra.mxu0 %v360
    %520 = vmatprep.subr.bf16.mxu0 %v359
    %521 = vmatpush1.bf16.msra.mxu0 %v358
    %522 = vmatprep.subr.bf16.mxu0 %v357
    %523 = vmatpush1.bf16.msra.mxu0 %v356
    %524 = vmatprep.subr.bf16.mxu0 %v355
    %525 = vmatpush1.bf16.msra.mxu0 %v354
    %526 = vmatprep.subr.bf16.mxu0 %v385
    %527 = vmatpush2.bf16.msra.mxu0 %v384
    %528 = vmatprep.subr.bf16.mxu0 %v383
    %529 = vmatpush2.bf16.msra.mxu0 %v382
    %530 = vmatprep.subr.bf16.mxu0 %v381
    %531 = vmatpush2.bf16.msra.mxu0 %v380
    %532 = vmatprep.subr.bf16.mxu0 %v379
    %533 = vmatpush2.bf16.msra.mxu0 %v378
    %534 = vmatprep.subr.bf16.mxu0 %v377
    %535 = vmatpush2.bf16.msra.mxu0 %v376
    %536 = vmatprep.subr.bf16.mxu0 %v375
    %537 = vmatpush2.bf16.msra.mxu0 %v374
    %538 = vmatprep.subr.bf16.mxu0 %v373
    %539 = vmatpush2.bf16.msra.mxu0 %v372
    %540 = vmatprep.subr.bf16.mxu0 %v371
    %541 = vmatpush2.bf16.msra.mxu0 %v370
    %542 = vmatprep.mubr.bf16.mxu0 %v115
    %543 = vmatmul.mubr.bf16.gmra.mxu0 %v114
    %v544 = vpop.f32.mrf.mxu0
    %v545 = vadd.f32 %v504, %v544
    %v546 = vpop.f32.mrf.mxu0
    %v547 = vadd.f32 %v506, %v546
    %v548 = vpop.f32.mrf.mxu0
    %v549 = vpop.f32.mrf.mxu0
    %550 = vdwg.mxu0
    %551 = vmatprep.subr.bf16.mxu0 0
    %552 = vmatpush1.bf16.msra.mxu0 0
    %553 = vmatprep.subr.bf16.mxu0 0
    %554 = vmatpush1.bf16.msra.mxu0 0
    %555 = vmatprep.subr.bf16.mxu0 0
    %556 = vmatpush1.bf16.msra.mxu0 0
    %557 = vmatprep.subr.bf16.mxu0 0
    %558 = vmatpush1.bf16.msra.mxu0 0
    %559 = vmatprep.subr.bf16.mxu0 0
    %560 = vmatpush1.bf16.msra.mxu0 0
    %561 = vmatprep.subr.bf16.mxu0 0
    %562 = vmatpush1.bf16.msra.mxu0 0
    %563 = vmatprep.subr.bf16.mxu0 %v467
    %564 = vmatpush1.bf16.msra.mxu0 %v464
    %565 = vmatprep.subr.bf16.mxu0 %v387
    %566 = vmatpush1.bf16.msra.mxu0 %v386
    %567 = vmatprep.subr.bf16.mxu0 0
    %568 = vmatpush2.bf16.msra.mxu0 0
    %569 = vmatprep.subr.bf16.mxu0 0
    %570 = vmatpush2.bf16.msra.mxu0 0
    %571 = vmatprep.subr.bf16.mxu0 0
    %572 = vmatpush2.bf16.msra.mxu0 0
    %573 = vmatprep.subr.bf16.mxu0 0
    %574 = vmatpush2.bf16.msra.mxu0 0
    %575 = vmatprep.subr.bf16.mxu0 0
    %576 = vmatpush2.bf16.msra.mxu0 0
    %577 = vmatprep.subr.bf16.mxu0 0
    %578 = vmatpush2.bf16.msra.mxu0 0
    %579 = vmatprep.subr.bf16.mxu0 0
    %580 = vmatpush2.bf16.msra.mxu0 0
    %581 = vmatprep.subr.bf16.mxu0 0
    %582 = vmatpush2.bf16.msra.mxu0 0
    %583 = vmatprep.mubr.bf16.mxu0 0
    %584 = vmatmul.mubr.bf16.gmra.mxu0 %v458
    %v585 = vpop.f32.mrf.mxu0
    %v586 = vadd.f32 %v545, %v585
    %v587 = vpop.f32.mrf.mxu0
    %v588 = vadd.f32 %v547, %v587
    %v589 = vpop.f32.mrf.mxu0
    %v590 = vpop.f32.mrf.mxu0
    %591 = vdwg.mxu0
    %v592 = vxor.u32 %v586, 2147483648
    %v593 = vxor.u32 %v588, 2147483648
    %v594 = vmul.f32 %v592, 1.442695
    %v595 = vpow.pop %v594
    %v596 = vmul.f32 %v593, 1.442695
    %v597 = vpow.pop %v596
    %v598 = vadd.f32 %v595, 1.0
    %v599 = vadd.f32 %v597, 1.0
    %v600 = vrcp.pop %v598
    %v601 = vmul.f32 1.0, %v600
    %v602 = vrcp.pop %v599
    %v603 = vmul.f32 1.0, %v602
    %v604 = vpack.c.bf16 %v601, %v601
    %v605 = vpack.c.bf16 %v603, %v603
    %v606 = vld [vmem:[%s3] sm:$0xff]
    %v607 = vld [vmem:[%s3 + $0x8] sm:$0xff]
    %v608 = vld [vmem:[%s3 + $0x10] sm:$0xf]
    %v609 = vld [vmem:[%s3 + $0x14] sm:$0xff]
    %v610 = vld [vmem:[%s3 + $0x1c] sm:$0xff]
    %v611 = vld [vmem:[%s3 + $0x24] sm:$0xf]
    %v612 = vld [vmem:[%s3 + $0x28] sm:$0xff]
    %v613 = vld [vmem:[%s3 + $0x30] sm:$0xff]
    %v614 = vld [vmem:[%s3 + $0x38] sm:$0xf]
    %v615 = vld [vmem:[%s3 + $0x3c] sm:$0xff]
    %v616 = vld [vmem:[%s3 + $0x44] sm:$0xff]
    %v617 = vld [vmem:[%s3 + $0x4c] sm:$0xf]
    %v618 = vld [vmem:[%s3 + $0x50] sm:$0xff]
    %v619 = vld [vmem:[%s3 + $0x58] sm:$0xff]
    %v620 = vld [vmem:[%s3 + $0x60] sm:$0xf]
    %v621 = vld [vmem:[%s3 + $0x64] sm:$0xff]
    %v622 = vld [vmem:[%s3 + $0x6c] sm:$0xff]
    %v623 = vld [vmem:[%s3 + $0x74] sm:$0xf]
    %v624 = vld [vmem:[%s3 + $0x78] sm:$0xff]
    %v625 = vld [vmem:[%s3 + $0x80] sm:$0xff]
    %v626 = vld [vmem:[%s3 + $0x88] sm:$0xf]
    %v627 = vld [vmem:[%s3 + $0x8c] sm:$0xff]
    %v628 = vld [vmem:[%s3 + $0x94] sm:$0xff]
    %v629 = vld [vmem:[%s3 + $0x9c] sm:$0xf]
    %v630 = vld [vmem:[%s3 + $0xa0] sm:$0xff]
    %v631 = vld [vmem:[%s3 + $0xa8] sm:$0xff]
    %v632 = vld [vmem:[%s3 + $0xb0] sm:$0xf]
    %v633 = vld [vmem:[%s3 + $0xb4] sm:$0xff]
    %v634 = vld [vmem:[%s3 + $0xbc] sm:$0xff]
    %v635 = vld [vmem:[%s3 + $0xc4] sm:$0xf]
    %v636 = vld [vmem:[%s3 + $0xc8] sm:$0xff]
    %v637 = vld [vmem:[%s3 + $0xd0] sm:$0xff]
    %v638 = vld [vmem:[%s3 + $0xd8] sm:$0xf]
    %v639 = vld [vmem:[%s3 + $0xdc] sm:$0xff]
    %v640 = vld [vmem:[%s3 + $0xe4] sm:$0xff]
    %v641 = vld [vmem:[%s3 + $0xec] sm:$0xf]
    %v642 = vld [vmem:[%s3 + $0xf0] sm:$0xff]
    %v643 = vld [vmem:[%s3 + $0xf8] sm:$0xff]
    %v644 = vld [vmem:[%s3 + $0x100] sm:$0xf]
    %v645 = vld [vmem:[%s3 + $0x104] sm:$0xff]
    %v646 = vld [vmem:[%s3 + $0x10c] sm:$0xff]
    %v647 = vld [vmem:[%s3 + $0x114] sm:$0xf]
    %v648 = vld [vmem:[%s3 + $0x118] sm:$0xff]
    %v649 = vld [vmem:[%s3 + $0x120] sm:$0xff]
    %v650 = vld [vmem:[%s3 + $0x128] sm:$0xf]
    %v651 = vld [vmem:[%s3 + $0x12c] sm:$0xff]
    %v652 = vld [vmem:[%s3 + $0x134] sm:$0xff]
    %v653 = vld [vmem:[%s3 + $0x13c] sm:$0xf]
    %v654 = vld [vmem:[%s3 + $0x140] sm:$0xff]
    %v655 = vld [vmem:[%s3 + $0x148] sm:$0xff]
    %v656 = vld [vmem:[%s3 + $0x150] sm:$0xf]
    %v657 = vld [vmem:[%s3 + $0x154] sm:$0xff]
    %v658 = vld [vmem:[%s3 + $0x15c] sm:$0xff]
    %v659 = vld [vmem:[%s3 + $0x164] sm:$0xf]
    %v660 = vld [vmem:[%s4] sm:$0x1f]
    %v662 = vlaneseq
    %v663 = vshrl.u32 %v662, 7
    %v664 = vsub.s32 0, %v663
    %v665 = vrot.slane %v660, %v664
    %v666 = vlaneseq
    %v667 = vshrl.u32 %v666, 7
    %v668 = vsub.s32 1, %v667
    %v669 = vrot.slane %v660, %v668
    %v670 = vlaneseq
    %v671 = vshrl.u32 %v670, 7
    %v672 = vsub.s32 2, %v671
    %v673 = vrot.slane %v660, %v672
    %v674 = vlaneseq
    %v675 = vshrl.u32 %v674, 7
    %v676 = vsub.s32 3, %v675
    %v677 = vrot.slane %v660, %v676
    %v678 = vlaneseq
    %v679 = vshrl.u32 %v678, 7
    %v680 = vsub.s32 4, %v679
    %v681 = vrot.slane %v660, %v680
    %v741 = vunpack.c.l.b16 %v606
    %v742 = vunpack.c.h.b16 %v606
    %v743 = vunpack.c.l.b16 %v607
    %v744 = vunpack.c.h.b16 %v607
    %v745 = vunpack.c.l.b16 %v608
    %v746 = vunpack.c.l.b16 %v609
    %v747 = vunpack.c.h.b16 %v609
    %v748 = vunpack.c.l.b16 %v610
    %v749 = vunpack.c.h.b16 %v610
    %v750 = vunpack.c.l.b16 %v611
    %v751 = vunpack.c.l.b16 %v612
    %v752 = vunpack.c.h.b16 %v612
    %v753 = vunpack.c.l.b16 %v613
    %v754 = vunpack.c.h.b16 %v613
    %v755 = vunpack.c.l.b16 %v614
    %v756 = vunpack.c.l.b16 %v615
    %v757 = vunpack.c.h.b16 %v615
    %v758 = vunpack.c.l.b16 %v616
    %v759 = vunpack.c.h.b16 %v616
    %v760 = vunpack.c.l.b16 %v617
    %v761 = vunpack.c.l.b16 %v618
    %v762 = vunpack.c.h.b16 %v618
    %v763 = vunpack.c.l.b16 %v619
    %v764 = vunpack.c.h.b16 %v619
    %v765 = vunpack.c.l.b16 %v620
    %v766 = vunpack.c.l.b16 %v621
    %v767 = vunpack.c.h.b16 %v621
    %v768 = vunpack.c.l.b16 %v622
    %v769 = vunpack.c.h.b16 %v622
    %v770 = vunpack.c.l.b16 %v623
    %v771 = vunpack.c.l.b16 %v624
    %v772 = vunpack.c.h.b16 %v624
    %v773 = vunpack.c.l.b16 %v625
    %v774 = vunpack.c.h.b16 %v625
    %v775 = vunpack.c.l.b16 %v626
    %v776 = vunpack.c.l.b16 %v627
    %v777 = vunpack.c.h.b16 %v627
    %v778 = vunpack.c.l.b16 %v628
    %v779 = vunpack.c.h.b16 %v628
    %v780 = vunpack.c.l.b16 %v629
    %v781 = vunpack.c.l.b16 %v630
    %v782 = vunpack.c.h.b16 %v630
    %v783 = vunpack.c.l.b16 %v631
    %v784 = vunpack.c.h.b16 %v631
    %v785 = vunpack.c.l.b16 %v632
    %v786 = vunpack.c.l.b16 %v633
    %v787 = vunpack.c.h.b16 %v633
    %v788 = vunpack.c.l.b16 %v634
    %v789 = vunpack.c.h.b16 %v634
    %v790 = vunpack.c.l.b16 %v635
    %v791 = vunpack.c.l.b16 %v636
    %v792 = vunpack.c.h.b16 %v636
    %v793 = vunpack.c.l.b16 %v637
    %v794 = vunpack.c.h.b16 %v637
    %v795 = vunpack.c.l.b16 %v638
    %v796 = vunpack.c.l.b16 %v639
    %v797 = vunpack.c.h.b16 %v639
    %v798 = vunpack.c.l.b16 %v640
    %v799 = vunpack.c.h.b16 %v640
    %v800 = vunpack.c.l.b16 %v641
    %v801 = vunpack.c.l.b16 %v642
    %v802 = vunpack.c.h.b16 %v642
    %v803 = vunpack.c.l.b16 %v643
    %v804 = vunpack.c.h.b16 %v643
    %v805 = vunpack.c.l.b16 %v644
    %v806 = vunpack.c.l.b16 %v645
    %v807 = vunpack.c.h.b16 %v645
    %v808 = vunpack.c.l.b16 %v646
    %v809 = vunpack.c.h.b16 %v646
    %v810 = vunpack.c.l.b16 %v647
    %v811 = vunpack.c.l.b16 %v648
    %v812 = vunpack.c.h.b16 %v648
    %v813 = vunpack.c.l.b16 %v649
    %v814 = vunpack.c.h.b16 %v649
    %v815 = vunpack.c.l.b16 %v650
    %v816 = vunpack.c.l.b16 %v651
    %v817 = vunpack.c.h.b16 %v651
    %v818 = vunpack.c.l.b16 %v652
    %v819 = vunpack.c.h.b16 %v652
    %v820 = vunpack.c.l.b16 %v653
    %v821 = vunpack.c.l.b16 %v654
    %v822 = vunpack.c.h.b16 %v654
    %v823 = vunpack.c.l.b16 %v655
    %v824 = vunpack.c.h.b16 %v655
    %v825 = vunpack.c.l.b16 %v656
    %v826 = vunpack.c.l.b16 %v657
    %v827 = vunpack.c.h.b16 %v657
    %v828 = vunpack.c.l.b16 %v658
    %v829 = vunpack.c.h.b16 %v658
    %v830 = vunpack.c.l.b16 %v659
    %v831 = vpack.c.b16 %v746, %v741
    %v832 = vpack.c.b16 %v747, %v742
    %v833 = vpack.c.b16 %v748, %v743
    %v834 = vpack.c.b16 %v749, %v744
    %v835 = vpack.c.b16 %v750, %v745
    %v836 = vpack.c.b16 %v756, %v751
    %v837 = vpack.c.b16 %v757, %v752
    %v838 = vpack.c.b16 %v758, %v753
    %v839 = vpack.c.b16 %v759, %v754
    %v840 = vpack.c.b16 %v760, %v755
    %v841 = vpack.c.b16 %v766, %v761
    %v842 = vpack.c.b16 %v767, %v762
    %v843 = vpack.c.b16 %v768, %v763
    %v844 = vpack.c.b16 %v769, %v764
    %v845 = vpack.c.b16 %v770, %v765
    %v846 = vpack.c.b16 %v776, %v771
    %v847 = vpack.c.b16 %v777, %v772
    %v848 = vpack.c.b16 %v778, %v773
    %v849 = vpack.c.b16 %v779, %v774
    %v850 = vpack.c.b16 %v780, %v775
    %v851 = vpack.c.b16 %v786, %v781
    %v852 = vpack.c.b16 %v787, %v782
    %v853 = vpack.c.b16 %v788, %v783
    %v854 = vpack.c.b16 %v789, %v784
    %v855 = vpack.c.b16 %v790, %v785
    %v856 = vpack.c.b16 %v796, %v791
    %v857 = vpack.c.b16 %v797, %v792
    %v858 = vpack.c.b16 %v798, %v793
    %v859 = vpack.c.b16 %v799, %v794
    %v860 = vpack.c.b16 %v800, %v795
    %v861 = vpack.c.b16 %v806, %v801
    %v862 = vpack.c.b16 %v807, %v802
    %v863 = vpack.c.b16 %v808, %v803
    %v864 = vpack.c.b16 %v809, %v804
    %v865 = vpack.c.b16 %v810, %v805
    %v866 = vpack.c.b16 %v816, %v811
    %v867 = vpack.c.b16 %v817, %v812
    %v868 = vpack.c.b16 %v818, %v813
    %v869 = vpack.c.b16 %v819, %v814
    %v870 = vpack.c.b16 %v820, %v815
    %v871 = vpack.c.b16 %v826, %v821
    %v872 = vpack.c.b16 %v827, %v822
    %v873 = vpack.c.b16 %v828, %v823
    %v874 = vpack.c.b16 %v829, %v824
    %v875 = vpack.c.b16 %v830, %v825
    %vm921 = vcmask 130048
    %v923 = vsel %vm921, %v605, 0
    %925 = vmatprep.subr.bf16.mxu0 %v867
    %926 = vmatpush1.bf16.msra.mxu0 %v866
    %927 = vmatprep.subr.bf16.mxu0 %v862
    %928 = vmatpush1.bf16.msra.mxu0 %v861
    %929 = vmatprep.subr.bf16.mxu0 %v857
    %930 = vmatpush1.bf16.msra.mxu0 %v856
    %931 = vmatprep.subr.bf16.mxu0 %v852
    %932 = vmatpush1.bf16.msra.mxu0 %v851
    %933 = vmatprep.subr.bf16.mxu0 %v847
    %934 = vmatpush1.bf16.msra.mxu0 %v846
    %935 = vmatprep.subr.bf16.mxu0 %v842
    %936 = vmatpush1.bf16.msra.mxu0 %v841
    %937 = vmatprep.subr.bf16.mxu0 %v837
    %938 = vmatpush1.bf16.msra.mxu0 %v836
    %939 = vmatprep.subr.bf16.mxu0 %v832
    %940 = vmatpush1.bf16.msra.mxu0 %v831
    %941 = vmatprep.subr.bf16.mxu0 0
    %942 = vmatpush2.bf16.msra.mxu0 0
    %943 = vmatprep.subr.bf16.mxu0 0
    %944 = vmatpush2.bf16.msra.mxu0 0
    %945 = vmatprep.subr.bf16.mxu0 0
    %946 = vmatpush2.bf16.msra.mxu0 0
    %947 = vmatprep.subr.bf16.mxu0 0
    %948 = vmatpush2.bf16.msra.mxu0 0
    %949 = vmatprep.subr.bf16.mxu0 0
    %950 = vmatpush2.bf16.msra.mxu0 0
    %951 = vmatprep.subr.bf16.mxu0 0
    %952 = vmatpush2.bf16.msra.mxu0 0
    %953 = vmatprep.subr.bf16.mxu0 0
    %954 = vmatpush2.bf16.msra.mxu0 0
    %955 = vmatprep.subr.bf16.mxu0 %v872
    %956 = vmatpush2.bf16.msra.mxu0 %v871
    %957 = vmatprep.mubr.bf16.mxu0 %v923
    %958 = vmatmul.mubr.bf16.gmra.mxu0 %v604
    %v959 = vpop.f32.mrf.mxu0
    %v960 = vadd.f32 %v665, %v959
    %v961 = vpop.f32.mrf.mxu0
    %v962 = vadd.f32 %v669, %v961
    %v963 = vpop.f32.mrf.mxu0
    %v964 = vpop.f32.mrf.mxu0
    %965 = vdwg.mxu0
    %966 = vmatprep.subr.bf16.mxu0 %v869
    %967 = vmatpush1.bf16.msra.mxu0 %v868
    %968 = vmatprep.subr.bf16.mxu0 %v864
    %969 = vmatpush1.bf16.msra.mxu0 %v863
    %970 = vmatprep.subr.bf16.mxu0 %v859
    %971 = vmatpush1.bf16.msra.mxu0 %v858
    %972 = vmatprep.subr.bf16.mxu0 %v854
    %973 = vmatpush1.bf16.msra.mxu0 %v853
    %974 = vmatprep.subr.bf16.mxu0 %v849
    %975 = vmatpush1.bf16.msra.mxu0 %v848
    %976 = vmatprep.subr.bf16.mxu0 %v844
    %977 = vmatpush1.bf16.msra.mxu0 %v843
    %978 = vmatprep.subr.bf16.mxu0 %v839
    %979 = vmatpush1.bf16.msra.mxu0 %v838
    %980 = vmatprep.subr.bf16.mxu0 %v834
    %981 = vmatpush1.bf16.msra.mxu0 %v833
    %982 = vmatprep.subr.bf16.mxu0 0
    %983 = vmatpush2.bf16.msra.mxu0 0
    %984 = vmatprep.subr.bf16.mxu0 0
    %985 = vmatpush2.bf16.msra.mxu0 0
    %986 = vmatprep.subr.bf16.mxu0 0
    %987 = vmatpush2.bf16.msra.mxu0 0
    %988 = vmatprep.subr.bf16.mxu0 0
    %989 = vmatpush2.bf16.msra.mxu0 0
    %990 = vmatprep.subr.bf16.mxu0 0
    %991 = vmatpush2.bf16.msra.mxu0 0
    %992 = vmatprep.subr.bf16.mxu0 0
    %993 = vmatpush2.bf16.msra.mxu0 0
    %994 = vmatprep.subr.bf16.mxu0 0
    %995 = vmatpush2.bf16.msra.mxu0 0
    %996 = vmatprep.subr.bf16.mxu0 %v874
    %997 = vmatpush2.bf16.msra.mxu0 %v873
    %998 = vmatprep.mubr.bf16.mxu0 %v923
    %999 = vmatmul.mubr.bf16.gmra.mxu0 %v604
    %v1000 = vpop.f32.mrf.mxu0
    %v1001 = vadd.f32 %v673, %v1000
    %v1002 = vpop.f32.mrf.mxu0
    %v1003 = vadd.f32 %v677, %v1002
    %v1004 = vpop.f32.mrf.mxu0
    %v1005 = vpop.f32.mrf.mxu0
    %1006 = vdwg.mxu0
    %1007 = vmatprep.subr.bf16.mxu0 0
    %1008 = vmatpush1.bf16.msra.mxu0 %v870
    %1009 = vmatprep.subr.bf16.mxu0 0
    %1010 = vmatpush1.bf16.msra.mxu0 %v865
    %1011 = vmatprep.subr.bf16.mxu0 0
    %1012 = vmatpush1.bf16.msra.mxu0 %v860
    %1013 = vmatprep.subr.bf16.mxu0 0
    %1014 = vmatpush1.bf16.msra.mxu0 %v855
    %1015 = vmatprep.subr.bf16.mxu0 0
    %1016 = vmatpush1.bf16.msra.mxu0 %v850
    %1017 = vmatprep.subr.bf16.mxu0 0
    %1018 = vmatpush1.bf16.msra.mxu0 %v845
    %1019 = vmatprep.subr.bf16.mxu0 0
    %1020 = vmatpush1.bf16.msra.mxu0 %v840
    %1021 = vmatprep.subr.bf16.mxu0 0
    %1022 = vmatpush1.bf16.msra.mxu0 %v835
    %1023 = vmatprep.subr.bf16.mxu0 0
    %1024 = vmatpush2.bf16.msra.mxu0 0
    %1025 = vmatprep.subr.bf16.mxu0 0
    %1026 = vmatpush2.bf16.msra.mxu0 0
    %1027 = vmatprep.subr.bf16.mxu0 0
    %1028 = vmatpush2.bf16.msra.mxu0 0
    %1029 = vmatprep.subr.bf16.mxu0 0
    %1030 = vmatpush2.bf16.msra.mxu0 0
    %1031 = vmatprep.subr.bf16.mxu0 0
    %1032 = vmatpush2.bf16.msra.mxu0 0
    %1033 = vmatprep.subr.bf16.mxu0 0
    %1034 = vmatpush2.bf16.msra.mxu0 0
    %1035 = vmatprep.subr.bf16.mxu0 0
    %1036 = vmatpush2.bf16.msra.mxu0 0
    %1037 = vmatprep.subr.bf16.mxu0 0
    %1038 = vmatpush2.bf16.msra.mxu0 %v875
    %1039 = vmatprep.mubr.bf16.mxu0 %v923
    %1040 = vmatmul.mubr.bf16.gmra.mxu0 %v604
    %v1041 = vpop.f32.mrf.mxu0
    %v1042 = vadd.f32 %v681, %v1041
    %v1043 = vpop.f32.mrf.mxu0
    %v1044 = vpop.f32.mrf.mxu0
    %v1045 = vpop.f32.mrf.mxu0
    %1046 = vdwg.mxu0
    %v1047 = vxor.u32 %v960, 2147483648
    %v1048 = vxor.u32 %v962, 2147483648
    %v1049 = vxor.u32 %v1001, 2147483648
    %v1050 = vxor.u32 %v1003, 2147483648
    %v1051 = vxor.u32 %v1042, 2147483648
    %v1052 = vmul.f32 %v1047, 1.442695
    %v1053 = vpow.pop %v1052
    %v1054 = vmul.f32 %v1048, 1.442695
    %v1055 = vpow.pop %v1054
    %v1056 = vmul.f32 %v1049, 1.442695
    %v1057 = vpow.pop %v1056
    %v1058 = vmul.f32 %v1050, 1.442695
    %v1059 = vpow.pop %v1058
    %v1060 = vmul.f32 %v1051, 1.442695
    %v1061 = vpow.pop %v1060
    %v1062 = vadd.f32 %v1053, 1.0
    %v1063 = vadd.f32 %v1055, 1.0
    %v1064 = vadd.f32 %v1057, 1.0
    %v1065 = vadd.f32 %v1059, 1.0
    %v1066 = vadd.f32 %v1061, 1.0
    %v1067 = vrcp.pop %v1062
    %v1068 = vmul.f32 1.0, %v1067
    %v1069 = vrcp.pop %v1063
    %v1070 = vmul.f32 1.0, %v1069
    %v1071 = vrcp.pop %v1064
    %v1072 = vmul.f32 1.0, %v1071
    %v1073 = vrcp.pop %v1065
    %v1074 = vmul.f32 1.0, %v1073
    %v1075 = vrcp.pop %v1066
    %v1076 = vmul.f32 1.0, %v1075
    %1077 = vst [vmem:[#allocation2] sm:$0xff] %v1068
    %1078 = vst [vmem:[#allocation2 + $0x8] sm:$0xff] %v1070
    %1079 = vst [vmem:[#allocation2 + $0x10] sm:$0xff] %v1072
    %1080 = vst [vmem:[#allocation2 + $0x18] sm:$0xff] %v1074
    %1081 = vst [vmem:[#allocation2 + $0x20] sm:$0xff] %v1076
    // Predicated region
    $region22: #{tpu_custom_call.1} parent=1 // pred_check
      _
    $region23: #{tpu_custom_call.1} parent=1 // pred_check_branch
      %1083 = sbr.rel (0) target = $region25
    $region24: #{tpu_custom_call.1} parent=1 // pred_region
      %s1085 = ssub.s32 640, 640
      %1086 = vsyncadd [#allocation3], %s1085
      %s1088 = sshll.u32 [#allocation2], 4
      %s1089 = int_to_ptr.vmem [resolvable:$true] %s1088
      %1091 = dma.vmem_to_hbm [thread:$0]  %s1089, 640, %s5, [#allocation3]
    $region25: #{tpu_custom_call.1} parent=1 // pred_fallthru
      _
    // Predicated region
    $region26: #{tpu_custom_call.1} parent=1 // pred_check
      _
    $region27: #{tpu_custom_call.1} parent=1 // pred_check_branch
      %1093 = sbr.rel (0) target = $region29
    $region28: #{tpu_custom_call.1} parent=1 // pred_region
      %1094 = dma.done [#allocation3], 640
    $region29: #{tpu_custom_call.1} parent=1 // pred_fallthru
      _
    %1095 = vsyncpa [#allocation3], 1

</llo_original>
